<compile_context>
chip_gen: v7x
topology: tpu7x:2x2x1
jax: 0.10.0
libtpu: 0.0.40
codegen_flags: <defaults>
</compile_context>

<pallas_src>
import functools

import numpy as np

import jax
import jax.numpy as jnp
from jax.experimental import pallas as pl
from jax.experimental.pallas import tpu as pltpu

VMEM_LIMIT = 32 * 1024 * 1024

# kernel-tap indices used by the 2x2 depthwise in the fused tail
# (output position p, input position q) -> 3x3 weight index, derived from
# out[py,px] = sum_q x[qy,qx] * w[1+qy-py, 1+qx-px]
_DW_IDX = ((4, 5, 7, 8),
           (3, 4, 6, 7),
           (1, 2, 4, 5),
           (0, 1, 3, 4))


# ----------------------------------------------------------------------------
# Pallas kernels
# ----------------------------------------------------------------------------
def _stem_kernel(x_ref, w_ref, b_ref, o_ref):
    # im2col'd 3x3/s2 stem conv: (rows, 27) @ (27, 128) + bias, ReLU6
    y = jnp.dot(x_ref[0], w_ref[...], preferred_element_type=jnp.float32)
    o_ref[0] = jnp.clip(y + b_ref[...], 0.0, 6.0).astype(o_ref.dtype)


def _spatial_block_kernel(x_ref, mask_ref, ew_ref, eb_ref, dw_ref, db_ref,
                          pw_ref, pb_ref, *rest, h, w, stride, use_res):
    """Fused inverted residual (expand 1x1 -> depthwise 3x3 -> project 1x1 [+res])
    on a width-row-padded map: activation rows are laid out as y*(w+2)+x."""
    if stride == 2:
        sel_ref, o_ref, hpad_ref = rest
    else:
        o_ref, hpad_ref = rest

    wp = w + 2
    rows = h * wp
    hid_p = hpad_ref.shape[1]
    halo_rows = hpad_ref.shape[0]

    # keep the halo borders at zero (top pad row + first left column, bottom pad
    # rows + slack); the interior is fully overwritten below every grid step, so
    # no cross-step scratch dependency exists (megacore-safe).
    hpad_ref[0:wp + 1, :] = jnp.zeros((wp + 1, hid_p), hpad_ref.dtype)
    tail0 = (h + 1) * wp + 1
    hpad_ref[tail0:halo_rows, :] = jnp.zeros((halo_rows - tail0, hid_p),
                                             hpad_ref.dtype)

    # ---- expand 1x1 (folded BN) + ReLU6: one MXU matmul over the whole map
    hid = jnp.dot(x_ref[0], ew_ref[...], preferred_element_type=jnp.float32)
    hid = jnp.clip(hid + eb_ref[...], 0.0, 6.0)
    hid = hid * mask_ref[...]                      # zero the row-padding columns
    # single contiguous store into the flat halo (bf16)
    hpad_ref[wp + 1:wp + 1 + rows, :] = hid.astype(hpad_ref.dtype)

    # ---- depthwise 3x3 (folded BN) + ReLU6: 9 whole-map slab MACs, f32 VPU math
    dw = dw_ref[...]                               # (9, hid_p), loaded once
    acc = jnp.zeros((rows, hid_p), jnp.float32)
    for dy in range(3):
        for dx in range(3):
            off = dy * wp + dx
            tap = hpad_ref[off:off + rows, :].astype(jnp.float32)
            acc = acc + tap * dw[dy * 3 + dx:dy * 3 + dx + 1]
    acc = jnp.clip(acc + db_ref[...], 0.0, 6.0).astype(jnp.bfloat16)

    if stride == 2:
        # pick the stride-2 output grid with one tiny bf16 selection matmul
        acc = jnp.dot(sel_ref[...], acc,
                      preferred_element_type=jnp.float32).astype(jnp.bfloat16)

    # ---- project 1x1 (folded BN, linear) + optional residual
    out = jnp.dot(acc, pw_ref[...], preferred_element_type=jnp.float32)
    out = out + pb_ref[...]
    if use_res:
        out = out + x_ref[0].astype(jnp.float32)
    o_ref[0] = out.astype(o_ref.dtype)


def _tail_kernel(x_ref, *refs, tail_cfg, n):
    """Every <=2x2 inverted residual + head 1x1 conv + GAP, batch folded into M.
    Activation layout is spatial-major: rows = [pos0 imgs..., pos1 imgs, ...]."""
    nb = len(tail_cfg)
    o_ref = refs[-2]
    dwo_ref = refs[-1]
    head_w_ref, head_b_ref = refs[6 * nb], refs[6 * nb + 1]

    cur = x_ref[...]                                   # (h*w*n, cin_p) bf16
    for bi, (hin, stride, use_res) in enumerate(tail_cfg):
        ew, eb, dw, db, pw, pb = refs[6 * bi:6 * bi + 6]
        hid_p = ew.shape[1]

        hid = jnp.dot(cur, ew[...], preferred_element_type=jnp.float32)
        hid = jnp.clip(hid + eb[...], 0.0, 6.0)
        dwv = dw[...]                                  # (9, hid_p) f32
        dbv = db[...]

        if hin == 1:
            # 1x1 map: only the center tap survives the zero padding
            dwo = jnp.clip(hid * dwv[4:5] + dbv, 0.0, 6.0).astype(jnp.bfloat16)
        else:
            # 2x2 map: 4 valid taps per output position, per-channel weights
            xs = [hid[q * n:(q + 1) * n, :] for q in range(4)]
            n_out = 1 if stride == 2 else 4
            dwo = None
            for p in range(n_out):
                kidx = _DW_IDX[p]
                a = xs[0] * dwv[kidx[0]:kidx[0] + 1]
                for q in range(1, 4):
                    a = a + xs[q] * dwv[kidx[q]:kidx[q] + 1]
                a = jnp.clip(a + dbv, 0.0, 6.0).astype(jnp.bfloat16)
                if n_out == 1:
                    dwo = a
                else:
                    dwo_ref[p * n:(p + 1) * n, 0:hid_p] = a
            if n_out > 1:
                dwo = dwo_ref[0:4 * n, 0:hid_p]

        out = jnp.dot(dwo, pw[...], preferred_element_type=jnp.float32) + pb[...]
        if use_res:
            out = out + cur.astype(jnp.float32)
        cur = out.astype(jnp.bfloat16)

    # head 1x1 conv + ReLU6; spatial is 1x1 here so the global average pool is
    # the identity and is fused away.
    y = jnp.dot(cur, head_w_ref[...], preferred_element_type=jnp.float32)
    o_ref[...] = jnp.clip(y + head_b_ref[...], 0.0, 6.0)


# ----------------------------------------------------------------------------
# Pallas wrappers
# ----------------------------------------------------------------------------
def stem_conv(patches, w, b):
    n, rows, kc = patches.shape
    cout_p = w.shape[1]
    return pl.pallas_call(
        _stem_kernel,
        out_shape=jax.ShapeDtypeStruct((n, rows, cout_p), jnp.bfloat16),
        grid=(n,),
        in_specs=[pl.BlockSpec((1, rows, kc), lambda i: (i, 0, 0)),
                  pl.BlockSpec((kc, cout_p), lambda i: (0, 0)),
                  pl.BlockSpec((1, cout_p), lambda i: (0, 0))],
        out_specs=pl.BlockSpec((1, rows, cout_p), lambda i: (i, 0, 0)),
        compiler_params=pltpu.CompilerParams(
            dimension_semantics=("parallel",), vmem_limit_bytes=VMEM_LIMIT),
    )(patches, w, b)


def spatial_block(x, blk, mask, sel, *, h, w, stride, use_res):
    """x: (N, h*(w+2), cin_p) bf16 row-padded -> (N, ho*(wo+2), cout_p) bf16."""
    n, rows, cin_p = x.shape
    wp = w + 2
    assert rows == h * wp
    hid_p = blk["exp_w"].shape[1]
    cout_p = blk["proj_w"].shape[1]
    ho = (h - 1) // stride + 1
    wo = (w - 1) // stride + 1
    rows_out = ho * (wo + 2) if stride == 2 else rows
    halo_rows = (h + 2) * wp + 8                       # slack keeps slab loads in bounds

    args = [x, mask, blk["exp_w"], blk["exp_b"], blk["dw_w"], blk["dw_b"],
            blk["proj_w"], blk["proj_b"]]
    in_specs = [
        pl.BlockSpec((1, rows, cin_p), lambda i: (i, 0, 0)),
        pl.BlockSpec((rows, 1), lambda i: (0, 0)),
        pl.BlockSpec((cin_p, hid_p), lambda i: (0, 0)),
        pl.BlockSpec((1, hid_p), lambda i: (0, 0)),
        pl.BlockSpec((9, hid_p), lambda i: (0, 0)),
        pl.BlockSpec((1, hid_p), lambda i: (0, 0)),
        pl.BlockSpec((hid_p, cout_p), lambda i: (0, 0)),
        pl.BlockSpec((1, cout_p), lambda i: (0, 0)),
    ]
    if stride == 2:
        args.append(sel)
        in_specs.append(pl.BlockSpec((rows_out, rows), lambda i: (0, 0)))

    return pl.pallas_call(
        functools.partial(_spatial_block_kernel, h=h, w=w, stride=stride,
                          use_res=use_res),
        out_shape=jax.ShapeDtypeStruct((n, rows_out, cout_p), jnp.bfloat16),
        grid=(n,),
        in_specs=in_specs,
        out_specs=pl.BlockSpec((1, rows_out, cout_p), lambda i: (i, 0, 0)),
        scratch_shapes=[pltpu.VMEM((halo_rows, hid_p), jnp.bfloat16)],
        compiler_params=pltpu.CompilerParams(
            dimension_semantics=("parallel",), vmem_limit_bytes=VMEM_LIMIT),
    )(*args)


def tail_forward(x2, blocks, tail_cfg, head_w, head_b, *, n):
    """One fused pallas_call for all <=2x2 blocks + head + GAP, batch folded."""
    rows, cin_p = x2.shape
    args = [x2]
    in_specs = [pl.BlockSpec((rows, cin_p), lambda i: (0, 0))]
    for blk in blocks:
        for name in ("exp_w", "exp_b", "dw_w", "dw_b", "proj_w", "proj_b"):
            a = blk[name]
            args.append(a)
            in_specs.append(pl.BlockSpec(a.shape, lambda i: (0, 0)))
    args += [head_w, head_b]
    in_specs += [pl.BlockSpec(head_w.shape, lambda i: (0, 0)),
                 pl.BlockSpec(head_b.shape, lambda i: (0, 0))]

    scratch_hid = max([blk["exp_w"].shape[1]
                       for blk, (hh, s, _) in zip(blocks, tail_cfg)
                       if hh == 2 and s == 1] + [128])
    out_dim = head_w.shape[1]
    # TODO(synk): grid=(1,) leaves v7x's second TensorCore idle for this tiny,
    # latency-bound tail; splitting the head's output channels across cores
    # would require a core_map and is not worth it at this problem size.
    return pl.pallas_call(
        functools.partial(_tail_kernel, tail_cfg=tail_cfg, n=n),
        out_shape=jax.ShapeDtypeStruct((n, out_dim), jnp.float32),
        grid=(1,),
        in_specs=in_specs,
        out_specs=pl.BlockSpec((n, out_dim), lambda i: (0, 0)),
        scratch_shapes=[pltpu.VMEM((4 * n, scratch_hid), jnp.bfloat16)],
        compiler_params=pltpu.CompilerParams(
            dimension_semantics=("arbitrary",), vmem_limit_bytes=VMEM_LIMIT),
    )(*args)


# ----------------------------------------------------------------------------
# MobileNetV2 architecture (width multiplier 1.0)
# ----------------------------------------------------------------------------
# (expand_ratio t, out_channels c, num_blocks n, stride s)
INVERTED_RESIDUAL_SETTINGS = [
    (1, 16, 1, 1),
    (6, 24, 2, 2),
    (6, 32, 3, 2),
    (6, 64, 4, 2),
    (6, 96, 3, 1),
    (6, 160, 3, 2),
    (6, 320, 1, 1),
]


def _rup128(c):
    return ((c + 127) // 128) * 128


def _pad2(a, r, c):
    return jnp.pad(a, ((0, r - a.shape[0]), (0, c - a.shape[1])))


def _row_mask(h, w):
    # 1.0 on valid columns of the row-padded (y*(w+2)+x) layout, 0.0 on padding
    wp = w + 2
    m = np.zeros((h * wp, 1), np.float32)
    for y in range(h):
        m[y * wp:y * wp + w, 0] = 1.0
    return jnp.asarray(m)


def _stride2_sel(h, w):
    # selection matrix mapping full-res row-padded rows -> stride-2 output rows
    wp = w + 2
    ho, wo = (h - 1) // 2 + 1, (w - 1) // 2 + 1
    wop = wo + 2
    s = np.zeros((ho * wop, h * wp), np.float32)
    for oy in range(ho):
        for ox in range(wo):
            s[oy * wop + ox, (2 * oy) * wp + 2 * ox] = 1.0
    return jnp.asarray(s, jnp.bfloat16)


def init_mobilenet_v2_params(key):
    keys = iter(jax.random.split(key, 256))

    def conv_w(shape, fan_in):
        return jax.random.normal(next(keys), shape, jnp.float32) * (2.0 / fan_in) ** 0.5

    def bias(c):
        return jax.random.normal(next(keys), (1, c), jnp.float32) * 0.01

    params = {
        # stem 3x3/s2 conv as an im2col matmul; rows ordered (ky, kx, cin)
        "stem_w": _pad2(conv_w((27, 32), 27), 27, 128).astype(jnp.bfloat16),
        "stem_b": _pad2(bias(32), 1, 128),
        "blocks": [],
    }
    config = []
    cin = 32
    for bi, (t, c, nblk, s) in enumerate(INVERTED_RESIDUAL_SETTINGS):
        for i in range(nblk):
            stride = s if i == 0 else 1
            hidden = cin * t
            cin_p, hid_p, cout_p = _rup128(cin), _rup128(hidden), _rup128(c)
            if t == 1:
                # identity expand is exact only because the sole t=1 block
                # consumes the post-ReLU6 stem output (extra clip is a no-op)
                assert bi == 0 and i == 0
                ew = jnp.eye(cin, dtype=jnp.float32)
                eb = jnp.zeros((1, hidden), jnp.float32)
            else:
                ew = conv_w((cin, hidden), cin)
                eb = bias(hidden)
            blk = {
                "exp_w": _pad2(ew, cin_p, hid_p).astype(jnp.bfloat16),
                "exp_b": _pad2(eb, 1, hid_p),
                "dw_w": _pad2(conv_w((9, hidden), 9), 9, hid_p),
                "dw_b": _pad2(bias(hidden), 1, hid_p),
                "proj_w": _pad2(conv_w((hidden, c), hidden),
                                hid_p, cout_p).astype(jnp.bfloat16),
                "proj_b": _pad2(bias(c), 1, cout_p),
            }
            params["blocks"].append(blk)
            config.append({"stride": stride, "use_res": stride == 1 and cin == c})
            cin = c
    params["head_w"] = _pad2(conv_w((cin, 1280), cin),
                             _rup128(cin), 1280).astype(jnp.bfloat16)
    params["head_b"] = bias(1280)
    return params, config


def model_v21_forward(params, config, x_nchw):
    """ModelV21.forward: MobileNetV2 features -> global avg pool -> (N, 1280)."""
    x = jnp.transpose(x_nchw, (0, 2, 3, 1))                 # NCHW -> NHWC
    n, h, w, _ = x.shape
    ho, wo = (h - 1) // 2 + 1, (w - 1) // 2 + 1
    wop = wo + 2

    # stem im2col (glue on the tiny 3-channel input; rows laid out row-padded)
    xp = jnp.pad(x, ((0, 0), (1, 1), (1, 1), (0, 0)))
    taps = [xp[:, dy:dy + (ho - 1) * 2 + 1:2, dx:dx + (wo - 1) * 2 + 1:2, :]
            for dy in range(3) for dx in range(3)]
    patches = jnp.concatenate(taps, axis=-1)                 # (N, ho, wo, 27)
    patches = jnp.pad(patches, ((0, 0), (0, 0), (0, wop - wo), (0, 0)))
    patches = patches.reshape(n, ho * wop, 27).astype(jnp.bfloat16)

    act = stem_conv(patches, params["stem_w"], params["stem_b"])
    h, w = ho, wo

    # per-image fused blocks while the map is >= 4x4
    idx = 0
    while idx < len(config) and h >= 4:
        cfg = config[idx]
        blk = params["blocks"][idx]
        mask = _row_mask(h, w)
        sel = _stride2_sel(h, w) if cfg["stride"] == 2 else None
        act = spatial_block(act, blk, mask, sel, h=h, w=w,
                            stride=cfg["stride"], use_res=cfg["use_res"])
        h = (h - 1) // cfg["stride"] + 1
        w = (w - 1) // cfg["stride"] + 1
        idx += 1

    # batch-folded fused tail (all 2x2 / 1x1 blocks + head + GAP)
    assert h == 2 and w == 2, "fused tail expects the remaining maps at 2x2 / 1x1"
    wp = w + 2
    cpad = act.shape[-1]
    act_v = act.reshape(n, h, wp, cpad)[:, :, :w, :]         # drop row padding
    act_t = jnp.transpose(act_v.reshape(n, h * w, cpad), (1, 0, 2))
    act_t = act_t.reshape(h * w * n, cpad)                   # spatial-major rows

    tail_cfg = []
    hh = h
    for cfg in config[idx:]:
        assert hh in (1, 2)
        tail_cfg.append((hh, cfg["stride"], cfg["use_res"]))
        hh = (hh - 1) // cfg["stride"] + 1
    assert hh == 1

    feats = tail_forward(act_t, params["blocks"][idx:], tuple(tail_cfg),
                         params["head_w"], params["head_b"], n=n)
    # TODO(synk): the reference applies a second AdaptiveAvgPool2d((1,1)) to the
    # already globally-pooled (N, 1280) features; on pooled features it is a
    # no-op, so it is fused into the tail kernel (the final 1x1 map makes the
    # global average pool the identity).  Output matches x.view(x.size(0), -1).
    return feats


# ----------------------------------------------------------------------------
if __name__ == "__main__":
    key = jax.random.PRNGKey(0)
    pkey, xkey = jax.random.split(key)
    params, config = init_mobilenet_v2_params(pkey)

    # NCHW input like PyTorch; 32x32 spatial survives the 5 stride-2 stages
    # (final feature map 1x1x1280).
    x = jax.random.normal(xkey, (2, 3, 32, 32), jnp.float32)

    out = model_v21_forward(params, config, x)
    out = jax.block_until_ready(out)
    assert out.shape == (2, 1280), out.shape
    assert out.dtype == jnp.float32
    print("KERNEL_OK")
</pallas_src>

<mosaic_0001>
module attributes {stable_mosaic.version = 11 : i64} {
  func.func @_stem_kernel(%arg0: i32, %arg1: memref<1x288x27xbf16, #tpu.memory_space<vmem>>, %arg2: memref<27x128xbf16, #tpu.memory_space<vmem>>, %arg3: memref<1x128xf32, #tpu.memory_space<vmem>>, %arg4: memref<1x288x128xbf16, #tpu.memory_space<vmem>>) attributes {dimension_semantics = [#tpu.dimension_semantics<parallel>], iteration_bounds = array<i64: 2>, scalar_prefetch = 0 : i64, scratch_operands = 0 : i64, tpu.core_type = #tpu.core_type<tc>, window_params = [{transform_indices = @transform_0, window_bounds = array<i64: 1, 288, 27>}, {pipeline_mode = #tpu.pipeline_mode<synchronous>, transform_indices = @transform_1, window_bounds = array<i64: 27, 128>}, {pipeline_mode = #tpu.pipeline_mode<synchronous>, transform_indices = @transform_2, window_bounds = array<i64: 1, 128>}, {transform_indices = @transform_3, window_bounds = array<i64: 1, 288, 128>}]} {
    %c0 = arith.constant 0 : index
    %c0_0 = arith.constant 0 : index
    %c0_1 = arith.constant 0 : index
    %0 = vector.load %arg1[%c0, %c0_0, %c0_1] : memref<1x288x27xbf16, #tpu.memory_space<vmem>>, vector<1x288x27xbf16>
    %1 = vector.shape_cast %0 : vector<1x288x27xbf16> to vector<288x27xbf16>
    %c0_2 = arith.constant 0 : index
    %c0_3 = arith.constant 0 : index
    %2 = vector.load %arg2[%c0_2, %c0_3] : memref<27x128xbf16, #tpu.memory_space<vmem>>, vector<27x128xbf16>
    %cst = arith.constant dense<0.000000e+00> : vector<288x128xf32>
    %3 = tpu.matmul %1, %2, %cst {dimension_numbers = #tpu.dot_dimension_numbers<[1], [0], [0], [1], [0, 0, 1, 1], [], []>} : vector<288x27xbf16>, vector<27x128xbf16>, vector<288x128xf32> -> vector<288x128xf32>
    %c0_4 = arith.constant 0 : index
    %c0_5 = arith.constant 0 : index
    %4 = vector.load %arg3[%c0_4, %c0_5] : memref<1x128xf32, #tpu.memory_space<vmem>>, vector<1x128xf32>
    %5 = vector.broadcast %4 : vector<1x128xf32> to vector<288x128xf32>
    %6 = arith.addf %3, %5 : vector<288x128xf32>
    %cst_6 = arith.constant 0.000000e+00 : f32
    %cst_7 = arith.constant 6.000000e+00 : f32
    %7 = vector.broadcast %cst_6 : f32 to vector<288x128xf32>
    %8 = arith.maximumf %7, %6 : vector<288x128xf32>
    %9 = vector.broadcast %cst_7 : f32 to vector<288x128xf32>
    %10 = arith.minimumf %9, %8 : vector<288x128xf32>
    %11 = arith.truncf %10 : vector<288x128xf32> to vector<288x128xbf16>
    %c0_8 = arith.constant 0 : index
    %c0_9 = arith.constant 0 : index
    %c0_10 = arith.constant 0 : index
    %12 = vector.load %arg4[%c0_8, %c0_9, %c0_10] : memref<1x288x128xbf16, #tpu.memory_space<vmem>>, vector<1x288x128xbf16>
    %13 = vector.shape_cast %12 : vector<1x288x128xbf16> to vector<288x128xbf16>
    %14 = vector.shape_cast %11 : vector<288x128xbf16> to vector<1x288x128xbf16>
    tpu.vector_store %arg4[%c0_8, %c0_9, %c0_10], %14 {strides = array<i32>} : memref<1x288x128xbf16, #tpu.memory_space<vmem>>, vector<1x288x128xbf16>,
    return
  }
  func.func @transform_0(%arg0: i32) -> (i32, i32, i32) {
    %c0_i32 = arith.constant 0 : i32
    %c0_i32_0 = arith.constant 0 : i32
    %c0_i32_1 = arith.constant 0 : i32
    return %arg0, %c0_i32, %c0_i32_0 : i32, i32, i32
  }
  func.func @transform_1(%arg0: i32) -> (i32, i32) {
    %c0_i32 = arith.constant 0 : i32
    %c0_i32_0 = arith.constant 0 : i32
    %c0_i32_1 = arith.constant 0 : i32
    return %c0_i32, %c0_i32_0 : i32, i32
  }
  func.func @transform_2(%arg0: i32) -> (i32, i32) {
    %c0_i32 = arith.constant 0 : i32
    %c0_i32_0 = arith.constant 0 : i32
    %c0_i32_1 = arith.constant 0 : i32
    return %c0_i32, %c0_i32_0 : i32, i32
  }
  func.func @transform_3(%arg0: i32) -> (i32, i32, i32) {
    %c0_i32 = arith.constant 0 : i32
    %c0_i32_0 = arith.constant 0 : i32
    %c0_i32_1 = arith.constant 0 : i32
    return %arg0, %c0_i32, %c0_i32_0 : i32, i32, i32
  }
}

</mosaic_0001>

<llo_original>
// kernel: tpu_custom_call.1
$region0: #{tpu_custom_call.1}
  #allocation0 [shape = 'u32[]', space=smem, size = 0x4, offset = 0x4, fixed_abs, tag = 'smem constant byte address 0x4 - core index']
  #allocation1 [shape = 'u32[144,128]{1,0:T(1,128)}', space=vmem, size = 0x12000, scoped, tag = 'internal scratch']
  %s0 = inlined_call_operand.vmem [shape: bf16[2,288,27], index: 0, kind: input, shape index: {}]
  %s1 = inlined_call_operand.vmem [shape: bf16[27,128], index: 1, kind: input, shape index: {}]
  %s2 = inlined_call_operand.vmem [shape: f32[1,128], index: 2, kind: input, shape index: {}]
  %s3 = inlined_call_operand.hbm [shape: bf16[2,288,128], index: 3, kind: output, shape index: {}]
  %s4 = sld [smem:[#allocation0]]
  $region45: #{tpu_custom_call.1} parent=0
    _
  %s6 = ssub.s32 1, %s4
  %s7 = scalar_select 0, %s6, %s4
  $region1: #{tpu_custom_call.1} parent=0
    #allocation2 [shape = 'u8[147456]{0}', space=vmem, size = 0x24000, scoped, tag = 'output window, operand 0']
    #allocation3 [shape = 's32[2]{0}', space=sflag, size = 0x8, scoped, tag = 'scoped memory for tpu_custom_call.1']
    %8 = vsyncpa [#allocation3], 0
    %s9 = scalar_lea.sflag [#allocation3], 1
    %10 = vsyncpa %s9, 0
    loop: start=0, step=1, limit=4
    $region2: #{tpu_custom_call.1} parent=1 // loop_pre_header
      _
    $region3: #{tpu_custom_call.1} parent=1 // loop_header
      %s12 = sphi 0, %s16
      %p13 = scmp.ge.s32.totalorder %s12, 4
      %s22 = sphi 0, %s24
      %s25 = sphi 0, %s22
      %s26 = sphi 0, %s25
      %s42 = sphi 0, %s26
      %s46 = sphi 0, %s46
      %s48 = sphi 0, %s46
      %s49 = sphi 0, %s48
      %s63 = sphi 0, %s49
      %s67 = sphi 0, %s67
      %s69 = sphi 0, %s67
      %s70 = sphi 0, %s69
      %s84 = sphi 0, %s70
      %s90 = sphi 0, %s92
      %s93 = sphi 0, %s90
      %s94 = sphi 0, %s93
      %s110 = sphi 0, %s94
    $region4: #{tpu_custom_call.1} parent=1 // loop_header_branch
      %15 = sbr.rel (%p13) target = $region8
    $region5: #{tpu_custom_call.1} parent=1 // loop_body
      %s17 = ssub.s32 %s12, 1
      %s18 = ssub.s32 %s12, 2
      %s19 = sadd.s32 %s12, 1
      %s20 = ssub.s32 %s12, %s19
      %p21 = scmp.eq.s32.totalorder %s20, 0
      %s23 = sadd.s32 %s22, 1
      %s24 = scalar_select %p21, %s22, %s23
      %p27 = pneg %p21
      %p28 = scmp.eq.s32.totalorder %s12, 1
      %p29 = por %p27, %p28
      %p30 = scmp.ne.s32.totalorder %s22, %s25
      %p31 = scmp.eq.s32.totalorder %s12, 0
      %p32 = por %p30, %p31
      %p33 = scmp.ne.s32.totalorder %s22, %s25
      %p34 = scmp.eq.s32.totalorder %s17, 1
      %p35 = por %p33, %p34
      %p36 = scmp.ne.s32.totalorder %s25, %s26
      %p37 = scmp.eq.s32.totalorder %s17, 0
      %p38 = por %p36, %p37
      %p39 = scmp.ne.s32.totalorder %s25, %s26
      %p40 = scmp.eq.s32.totalorder %s18, 1
      %p41 = por %p39, %p40
      %p43 = scmp.ne.s32.totalorder %s26, %s42
      %p44 = scmp.eq.s32.totalorder %s18, 0
      %p45 = por %p43, %p44
      %s47 = sadd.s32 %s46, 1
      %p50 = scmp.eq.s32.totalorder %s12, 1
      %p51 = scmp.ne.s32.totalorder %s46, %s48
      %p52 = scmp.eq.s32.totalorder %s12, 0
      %p53 = por %p51, %p52
      %p54 = scmp.ne.s32.totalorder %s46, %s48
      %p55 = scmp.eq.s32.totalorder %s17, 1
      %p56 = por %p54, %p55
      %p57 = scmp.ne.s32.totalorder %s48, %s49
      %p58 = scmp.eq.s32.totalorder %s17, 0
      %p59 = por %p57, %p58
      %p60 = scmp.ne.s32.totalorder %s48, %s49
      %p61 = scmp.eq.s32.totalorder %s18, 1
      %p62 = por %p60, %p61
      %p64 = scmp.ne.s32.totalorder %s49, %s63
      %p65 = scmp.eq.s32.totalorder %s18, 0
      %p66 = por %p64, %p65
      %s68 = sadd.s32 %s67, 1
      %p71 = scmp.eq.s32.totalorder %s12, 1
      %p72 = scmp.ne.s32.totalorder %s67, %s69
      %p73 = scmp.eq.s32.totalorder %s12, 0
      %p74 = por %p72, %p73
      %p75 = scmp.ne.s32.totalorder %s67, %s69
      %p76 = scmp.eq.s32.totalorder %s17, 1
      %p77 = por %p75, %p76
      %p78 = scmp.ne.s32.totalorder %s69, %s70
      %p79 = scmp.eq.s32.totalorder %s17, 0
      %p80 = por %p78, %p79
      %p81 = scmp.ne.s32.totalorder %s69, %s70
      %p82 = scmp.eq.s32.totalorder %s18, 1
      %p83 = por %p81, %p82
      %p85 = scmp.ne.s32.totalorder %s70, %s84
      %p86 = scmp.eq.s32.totalorder %s18, 0
      %p87 = por %p85, %p86
      %s88 = ssub.s32 %s12, %s19
      %p89 = scmp.eq.s32.totalorder %s88, 0
      %s91 = sadd.s32 %s90, 1
      %s92 = scalar_select %p89, %s90, %s91
      %p95 = pneg %p89
      %p96 = scmp.eq.s32.totalorder %s12, 1
      %p97 = por %p95, %p96
      %p98 = scmp.ne.s32.totalorder %s90, %s93
      %p99 = scmp.eq.s32.totalorder %s12, 0
      %p100 = por %p98, %p99
      %p101 = scmp.ne.s32.totalorder %s90, %s93
      %p102 = scmp.eq.s32.totalorder %s17, 1
      %p103 = por %p101, %p102
      %p104 = scmp.ne.s32.totalorder %s93, %s94
      %p105 = scmp.eq.s32.totalorder %s17, 0
      %p106 = por %p104, %p105
      %p107 = scmp.ne.s32.totalorder %s93, %s94
      %p108 = scmp.eq.s32.totalorder %s18, 1
      %p109 = por %p107, %p108
      %p111 = scmp.ne.s32.totalorder %s94, %s110
      %p112 = scmp.eq.s32.totalorder %s18, 0
      %p113 = por %p111, %p112
      %p114 = scmp.le.s32.totalorder 1, %s12
      %p115 = scmp.lt.s32.totalorder %s12, 3
      %p116 = pnand %p114, %p115
      %p117 = pneg %p116
      // Predicated region
      $region9: #{tpu_custom_call.1} parent=5 // pred_check
        _
      $region10: #{tpu_custom_call.1} parent=5 // pred_check_branch
        %119 = sbr.rel (%p116) target = $region12
      $region11: #{tpu_custom_call.1} parent=5 // pred_region
        %s120 = ssub.s32 %s12, 1
        // Predicated region
        $region13: #{tpu_custom_call.1} parent=11 // pred_check
          %p121 = pneg %p59
        $region14: #{tpu_custom_call.1} parent=11 // pred_check_branch
          %123 = sbr.rel (%p121) target = $region16
        $region15: #{tpu_custom_call.1} parent=11 // pred_region
          _
        $region16: #{tpu_custom_call.1} parent=11 // pred_fallthru
          _
        // Predicated region
        $region17: #{tpu_custom_call.1} parent=11 // pred_check
          %p124 = pneg %p80
        $region18: #{tpu_custom_call.1} parent=11 // pred_check_branch
          %126 = sbr.rel (%p124) target = $region20
        $region19: #{tpu_custom_call.1} parent=11 // pred_region
          _
        $region20: #{tpu_custom_call.1} parent=11 // pred_fallthru
          _
      $region12: #{tpu_custom_call.1} parent=5 // pred_fallthru
        _
      %p127 = scmp.lt.s32.totalorder %s12, 2
      // Predicated region
      $region21: #{tpu_custom_call.1} parent=5 // pred_check
        %p128 = pneg %p127
      $region22: #{tpu_custom_call.1} parent=5 // pred_check_branch
        %130 = sbr.rel (%p128) target = $region24
      $region23: #{tpu_custom_call.1} parent=5 // pred_region
        // Predicated region
        $region25: #{tpu_custom_call.1} parent=23 // pred_check
          %p131 = pneg %p32
        $region26: #{tpu_custom_call.1} parent=23 // pred_check_branch
          %133 = sbr.rel (%p131) target = $region28
        $region27: #{tpu_custom_call.1} parent=23 // pred_region
          %p134 = scmp.lt.s32.totalorder %s12, 1
          %s135 = scalar_select %p134, %s12, 1
          %s136 = smul.addr %s135, 36
          %s137 = smul.addr %s136, 4
          %s138 = scalar_lea.vmem %s0, %s137
        $region28: #{tpu_custom_call.1} parent=23 // pred_fallthru
          _
      $region24: #{tpu_custom_call.1} parent=5 // pred_fallthru
        _
      %p139 = scmp.le.s32.totalorder 1, %s12
      %p140 = scmp.lt.s32.totalorder %s12, 3
      %p141 = pnand %p139, %p140
      %p142 = pneg %p141
      // Predicated region
      $region29: #{tpu_custom_call.1} parent=5 // pred_check
        _
      $region30: #{tpu_custom_call.1} parent=5 // pred_check_branch
        %144 = sbr.rel (%p141) target = $region32
      $region31: #{tpu_custom_call.1} parent=5 // pred_region
        %s145 = ssub.s32 %s12, 1
        %p146 = scmp.lt.s32.totalorder %s17, 1
        %s147 = scalar_select %p146, %s17, 1
        %s148 = smul.addr %s147, 36
        %s149 = smul.addr %s148, 4
        %s150 = scalar_lea.vmem %s0, %s149
        %p151 = pneg %p38
        %p152 = pneg %p35
        %p153 = pneg %p59
        %p154 = pneg %p56
        %p155 = pneg %p80
        %p156 = pneg %p77
        %p157 = pneg %p106
        %p158 = pneg %p103
        %s159 = sand.u32 %s93, 1
        %s160 = scalar_lea.sflag [#allocation3], %s159
        %s161 = sand.u32 %s93, 1
        %s162 = smul.addr %s161, 144
        %s163 = scalar_lea.vmem [#allocation2], %s162
        %p164 = scmp.lt.s32.totalorder %s17, 1
        %s165 = scalar_select %p164, %s17, 1
        %s166 = smul.addr %s165, 36
        %s167 = smul.addr %s166, 4
        %s168 = scalar_lea.vmem %s0, %s167
        %v170 = vld [vmem:[%s168] sm:$0xf]
        %v171 = vld [vmem:[%s168 + $0x4] sm:$0xf]
        %v172 = vld [vmem:[%s168 + $0x8] sm:$0xf]
        %v173 = vld [vmem:[%s168 + $0xc] sm:$0xf]
        %v174 = vld [vmem:[%s168 + $0x10] sm:$0xf]
        %v175 = vld [vmem:[%s168 + $0x14] sm:$0xf]
        %v176 = vld [vmem:[%s168 + $0x18] sm:$0xf]
        %v177 = vld [vmem:[%s168 + $0x1c] sm:$0xf]
        %v178 = vld [vmem:[%s168 + $0x20] sm:$0xf]
        %v179 = vld [vmem:[%s168 + $0x24] sm:$0xf]
        %v180 = vld [vmem:[%s168 + $0x28] sm:$0xf]
        %v181 = vld [vmem:[%s168 + $0x2c] sm:$0xf]
        %v182 = vld [vmem:[%s168 + $0x30] sm:$0xf]
        %v183 = vld [vmem:[%s168 + $0x34] sm:$0xf]
        %v184 = vld [vmem:[%s168 + $0x38] sm:$0xf]
        %v185 = vld [vmem:[%s168 + $0x3c] sm:$0xf]
        %v186 = vld [vmem:[%s168 + $0x40] sm:$0xf]
        %v187 = vld [vmem:[%s168 + $0x44] sm:$0xf]
        %v188 = vld [vmem:[%s168 + $0x48] sm:$0xf]
        %v189 = vld [vmem:[%s168 + $0x4c] sm:$0xf]
        %v190 = vld [vmem:[%s168 + $0x50] sm:$0xf]
        %v191 = vld [vmem:[%s168 + $0x54] sm:$0xf]
        %v192 = vld [vmem:[%s168 + $0x58] sm:$0xf]
        %v193 = vld [vmem:[%s168 + $0x5c] sm:$0xf]
        %v194 = vld [vmem:[%s168 + $0x60] sm:$0xf]
        %v195 = vld [vmem:[%s168 + $0x64] sm:$0xf]
        %v196 = vld [vmem:[%s168 + $0x68] sm:$0xf]
        %v197 = vld [vmem:[%s168 + $0x6c] sm:$0xf]
        %v198 = vld [vmem:[%s168 + $0x70] sm:$0xf]
        %v199 = vld [vmem:[%s168 + $0x74] sm:$0xf]
        %v200 = vld [vmem:[%s168 + $0x78] sm:$0xf]
        %v201 = vld [vmem:[%s168 + $0x7c] sm:$0xf]
        %v202 = vld [vmem:[%s168 + $0x80] sm:$0xf]
        %v203 = vld [vmem:[%s168 + $0x84] sm:$0xf]
        %v204 = vld [vmem:[%s168 + $0x88] sm:$0xf]
        %v205 = vld [vmem:[%s168 + $0x8c] sm:$0xf]
        %v206 = vld [vmem:[%s1] sm:$0xf]
        %v207 = vld [vmem:[%s1 + $0x4] sm:$0xf]
        %v208 = vld [vmem:[%s1 + $0x8] sm:$0xf]
        %v209 = vld [vmem:[%s1 + $0xc] sm:$0x3]
        %v210 = vld [vmem:[%s2] sm:$0x1]
        %v212 = vlaneseq
        %v213 = vshrl.u32 %v212, 7
        %v214 = vsub.s32 0, %v213
        %v215 = vrot.slane %v210, %v214
        %v253 = vunpack.c.l.b16 %v170
        %v254 = vunpack.c.l.b16 %v171
        %v255 = vunpack.c.l.b16 %v172
        %v256 = vunpack.c.l.b16 %v173
        %v257 = vunpack.c.l.b16 %v174
        %v258 = vunpack.c.l.b16 %v175
        %v259 = vunpack.c.l.b16 %v176
        %v260 = vunpack.c.l.b16 %v177
        %v261 = vunpack.c.l.b16 %v178
        %v262 = vunpack.c.l.b16 %v179
        %v263 = vunpack.c.l.b16 %v180
        %v264 = vunpack.c.l.b16 %v181
        %v265 = vunpack.c.l.b16 %v182
        %v266 = vunpack.c.l.b16 %v183
        %v267 = vunpack.c.l.b16 %v184
        %v268 = vunpack.c.l.b16 %v185
        %v269 = vunpack.c.l.b16 %v186
        %v270 = vunpack.c.l.b16 %v187
        %v271 = vunpack.c.l.b16 %v188
        %v272 = vunpack.c.l.b16 %v189
        %v273 = vunpack.c.l.b16 %v190
        %v274 = vunpack.c.l.b16 %v191
        %v275 = vunpack.c.l.b16 %v192
        %v276 = vunpack.c.l.b16 %v193
        %v277 = vunpack.c.l.b16 %v194
        %v278 = vunpack.c.l.b16 %v195
        %v279 = vunpack.c.l.b16 %v196
        %v280 = vunpack.c.l.b16 %v197
        %v281 = vunpack.c.l.b16 %v198
        %v282 = vunpack.c.l.b16 %v199
        %v283 = vunpack.c.l.b16 %v200
        %v284 = vunpack.c.l.b16 %v201
        %v285 = vunpack.c.l.b16 %v202
        %v286 = vunpack.c.l.b16 %v203
        %v287 = vunpack.c.l.b16 %v204
        %v288 = vunpack.c.l.b16 %v205
        %v289 = vpack.c.b16 %v254, %v253
        %v290 = vpack.c.b16 %v256, %v255
        %v291 = vpack.c.b16 %v258, %v257
        %v292 = vpack.c.b16 %v260, %v259
        %v293 = vpack.c.b16 %v262, %v261
        %v294 = vpack.c.b16 %v264, %v263
        %v295 = vpack.c.b16 %v266, %v265
        %v296 = vpack.c.b16 %v268, %v267
        %v297 = vpack.c.b16 %v270, %v269
        %v298 = vpack.c.b16 %v272, %v271
        %v299 = vpack.c.b16 %v274, %v273
        %v300 = vpack.c.b16 %v276, %v275
        %v301 = vpack.c.b16 %v278, %v277
        %v302 = vpack.c.b16 %v280, %v279
        %v303 = vpack.c.b16 %v282, %v281
        %v304 = vpack.c.b16 %v284, %v283
        %v305 = vpack.c.b16 %v286, %v285
        %v306 = vpack.c.b16 %v288, %v287
        %v311 = vunpack.c.l.b16 %v206
        %v312 = vunpack.c.l.b16 %v207
        %v313 = vunpack.c.l.b16 %v208
        %v314 = vunpack.c.l.b16 %v209
        %v315 = vpack.c.b16 %v312, %v311
        %v316 = vpack.c.b16 %v314, %v313
        %vm318 = vcmask 220160
        %v320 = vsel %vm318, %v289, 0
        %v323 = vsel %vm318, %v290, 0
        %v326 = vsel %vm318, %v291, 0
        %v329 = vsel %vm318, %v292, 0
        %v332 = vsel %vm318, %v293, 0
        %v335 = vsel %vm318, %v294, 0
        %v338 = vsel %vm318, %v295, 0
        %v341 = vsel %vm318, %v296, 0
        %v344 = vsel %vm318, %v297, 0
        %v347 = vsel %vm318, %v298, 0
        %v350 = vsel %vm318, %v299, 0
        %v353 = vsel %vm318, %v300, 0
        %v356 = vsel %vm318, %v301, 0
        %v359 = vsel %vm318, %v302, 0
        %v362 = vsel %vm318, %v303, 0
        %v365 = vsel %vm318, %v304, 0
        %v368 = vsel %vm318, %v305, 0
        %v371 = vsel %vm318, %v306, 0
        %vm373 = vcmask 1044480
        %vm374 = vcmask 1045504
        %v375 = vsel %vm373, 4294967295, 65535
        %v376 = vsel %vm374, %v375, 0
        %v378 = vand.u32 %v316, %v376
        %380 = vmatprep.subr.bf16.mxu0 0
        %381 = vmatpush1.bf16.msra.mxu0 %v315
        %382 = vmatprep.subr.bf16.mxu0 0
        %383 = vmatpush1.bf16.msra.mxu0 %v378
        %384 = vmatprep.subr.bf16.mxu0 0
        %385 = vmatpush1.bf16.msra.mxu0 0
        %386 = vmatprep.subr.bf16.mxu0 0
        %387 = vmatpush1.bf16.msra.mxu0 0
        %388 = vmatprep.subr.bf16.mxu0 0
        %389 = vmatpush1.bf16.msra.mxu0 0
        %390 = vmatprep.subr.bf16.mxu0 0
        %391 = vmatpush1.bf16.msra.mxu0 0
        %392 = vmatprep.subr.bf16.mxu0 0
        %393 = vmatpush1.bf16.msra.mxu0 0
        %394 = vmatprep.subr.bf16.mxu0 0
        %395 = vmatpush1.bf16.msra.mxu0 0
        %396 = vmatprep.subr.bf16.mxu0 0
        %397 = vmatpush1.bf16.msra.mxu0 0
        %398 = vmatprep.subr.bf16.mxu0 0
        %399 = vmatpush1.bf16.msra.mxu0 0
        %400 = vmatprep.subr.bf16.mxu0 0
        %401 = vmatpush1.bf16.msra.mxu0 0
        %402 = vmatprep.subr.bf16.mxu0 0
        %403 = vmatpush1.bf16.msra.mxu0 0
        %404 = vmatprep.subr.bf16.mxu0 0
        %405 = vmatpush1.bf16.msra.mxu0 0
        %406 = vmatprep.subr.bf16.mxu0 0
        %407 = vmatpush1.bf16.msra.mxu0 0
        %408 = vmatprep.subr.bf16.mxu0 0
        %409 = vmatpush1.bf16.msra.mxu0 0
        %410 = vmatprep.subr.bf16.mxu0 0
        %411 = vmatpush1.bf16.msra.mxu0 0
        %412 = vmatprep.mubr.bf16.mxu0 0
        %413 = vmatmul.mubr.bf16.gmra.mrb[0].mxu0 %v320
        %v414 = vpop.f32.mrb[0].mxu0
        %v415 = vadd.f32 %v215, %v414
        %v416 = vpop.f32.mrb[0].mxu0
        %v417 = vpop.f32.mrb[0].mxu0
        %v418 = vadd.f32 %v215, %v417
        %v419 = vpop.f32.mrb[0].mxu0
        %420 = vmatprep.mubr.bf16.mxu0 0
        %421 = vmatmul.mubr.bf16.gmra.mrb[0].mxu0 %v323
        %v422 = vpop.f32.mrb[0].mxu0
        %v423 = vadd.f32 %v215, %v422
        %v424 = vpop.f32.mrb[0].mxu0
        %v425 = vpop.f32.mrb[0].mxu0
        %v426 = vadd.f32 %v215, %v425
        %v427 = vpop.f32.mrb[0].mxu0
        %428 = vmatprep.mubr.bf16.mxu0 0
        %429 = vmatmul.mubr.bf16.gmra.mrb[0].mxu0 %v326
        %v430 = vpop.f32.mrb[0].mxu0
        %v431 = vadd.f32 %v215, %v430
        %v432 = vpop.f32.mrb[0].mxu0
        %v433 = vpop.f32.mrb[0].mxu0
        %v434 = vadd.f32 %v215, %v433
        %v435 = vpop.f32.mrb[0].mxu0
        %436 = vmatprep.mubr.bf16.mxu0 0
        %437 = vmatmul.mubr.bf16.gmra.mrb[0].mxu0 %v329
        %v438 = vpop.f32.mrb[0].mxu0
        %v439 = vadd.f32 %v215, %v438
        %v440 = vpop.f32.mrb[0].mxu0
        %v441 = vpop.f32.mrb[0].mxu0
        %v442 = vadd.f32 %v215, %v441
        %v443 = vpop.f32.mrb[0].mxu0
        %444 = vmatprep.mubr.bf16.mxu0 0
        %445 = vmatmul.mubr.bf16.gmra.mrb[0].mxu0 %v332
        %v446 = vpop.f32.mrb[0].mxu0
        %v447 = vadd.f32 %v215, %v446
        %v448 = vpop.f32.mrb[0].mxu0
        %v449 = vpop.f32.mrb[0].mxu0
        %v450 = vadd.f32 %v215, %v449
        %v451 = vpop.f32.mrb[0].mxu0
        %452 = vmatprep.mubr.bf16.mxu0 0
        %453 = vmatmul.mubr.bf16.gmra.mrb[0].mxu0 %v335
        %v454 = vpop.f32.mrb[0].mxu0
        %v455 = vadd.f32 %v215, %v454
        %v456 = vpop.f32.mrb[0].mxu0
        %v457 = vpop.f32.mrb[0].mxu0
        %v458 = vadd.f32 %v215, %v457
        %v459 = vpop.f32.mrb[0].mxu0
        %460 = vmatprep.mubr.bf16.mxu0 0
        %461 = vmatmul.mubr.bf16.gmra.mrb[0].mxu0 %v338
        %v462 = vpop.f32.mrb[0].mxu0
        %v463 = vadd.f32 %v215, %v462
        %v464 = vpop.f32.mrb[0].mxu0
        %v465 = vpop.f32.mrb[0].mxu0
        %v466 = vadd.f32 %v215, %v465
        %v467 = vpop.f32.mrb[0].mxu0
        %468 = vmatprep.mubr.bf16.mxu0 0
        %469 = vmatmul.mubr.bf16.gmra.mrb[0].mxu0 %v341
        %v470 = vpop.f32.mrb[0].mxu0
        %v471 = vadd.f32 %v215, %v470
        %v472 = vpop.f32.mrb[0].mxu0
        %v473 = vpop.f32.mrb[0].mxu0
        %v474 = vadd.f32 %v215, %v473
        %v475 = vpop.f32.mrb[0].mxu0
        %476 = vmatprep.mubr.bf16.mxu0 0
        %477 = vmatmul.mubr.bf16.gmra.mrb[0].mxu0 %v344
        %v478 = vpop.f32.mrb[0].mxu0
        %v479 = vadd.f32 %v215, %v478
        %v480 = vpop.f32.mrb[0].mxu0
        %v481 = vpop.f32.mrb[0].mxu0
        %v482 = vadd.f32 %v215, %v481
        %v483 = vpop.f32.mrb[0].mxu0
        %484 = vmatprep.mubr.bf16.mxu0 0
        %485 = vmatmul.mubr.bf16.gmra.mrb[0].mxu0 %v347
        %v486 = vpop.f32.mrb[0].mxu0
        %v487 = vadd.f32 %v215, %v486
        %v488 = vpop.f32.mrb[0].mxu0
        %v489 = vpop.f32.mrb[0].mxu0
        %v490 = vadd.f32 %v215, %v489
        %v491 = vpop.f32.mrb[0].mxu0
        %492 = vmatprep.mubr.bf16.mxu0 0
        %493 = vmatmul.mubr.bf16.gmra.mrb[0].mxu0 %v350
        %v494 = vpop.f32.mrb[0].mxu0
        %v495 = vadd.f32 %v215, %v494
        %v496 = vpop.f32.mrb[0].mxu0
        %v497 = vpop.f32.mrb[0].mxu0
        %v498 = vadd.f32 %v215, %v497
        %v499 = vpop.f32.mrb[0].mxu0
        %500 = vmatprep.mubr.bf16.mxu0 0
        %501 = vmatmul.mubr.bf16.gmra.mrb[0].mxu0 %v353
        %v502 = vpop.f32.mrb[0].mxu0
        %v503 = vadd.f32 %v215, %v502
        %v504 = vpop.f32.mrb[0].mxu0
        %v505 = vpop.f32.mrb[0].mxu0
        %v506 = vadd.f32 %v215, %v505
        %v507 = vpop.f32.mrb[0].mxu0
        %508 = vmatprep.mubr.bf16.mxu0 0
        %509 = vmatmul.mubr.bf16.gmra.mrb[0].mxu0 %v356
        %v510 = vpop.f32.mrb[0].mxu0
        %v511 = vadd.f32 %v215, %v510
        %v512 = vpop.f32.mrb[0].mxu0
        %v513 = vpop.f32.mrb[0].mxu0
        %v514 = vadd.f32 %v215, %v513
        %v515 = vpop.f32.mrb[0].mxu0
        %516 = vmatprep.mubr.bf16.mxu0 0
        %517 = vmatmul.mubr.bf16.gmra.mrb[0].mxu0 %v359
        %v518 = vpop.f32.mrb[0].mxu0
        %v519 = vadd.f32 %v215, %v518
        %v520 = vpop.f32.mrb[0].mxu0
        %v521 = vpop.f32.mrb[0].mxu0
        %v522 = vadd.f32 %v215, %v521
        %v523 = vpop.f32.mrb[0].mxu0
        %524 = vmatprep.mubr.bf16.mxu0 0
        %525 = vmatmul.mubr.bf16.gmra.mrb[0].mxu0 %v362
        %v526 = vpop.f32.mrb[0].mxu0
        %v527 = vadd.f32 %v215, %v526
        %v528 = vpop.f32.mrb[0].mxu0
        %v529 = vpop.f32.mrb[0].mxu0
        %v530 = vadd.f32 %v215, %v529
        %v531 = vpop.f32.mrb[0].mxu0
        %532 = vmatprep.mubr.bf16.mxu0 0
        %533 = vmatmul.mubr.bf16.gmra.mrb[0].mxu0 %v365
        %v534 = vpop.f32.mrb[0].mxu0
        %v535 = vadd.f32 %v215, %v534
        %v536 = vpop.f32.mrb[0].mxu0
        %v537 = vpop.f32.mrb[0].mxu0
        %v538 = vadd.f32 %v215, %v537
        %v539 = vpop.f32.mrb[0].mxu0
        %540 = vmatprep.mubr.bf16.mxu0 0
        %541 = vmatmul.mubr.bf16.gmra.mrb[0].mxu0 %v368
        %v542 = vpop.f32.mrb[0].mxu0
        %v543 = vadd.f32 %v215, %v542
        %v544 = vpop.f32.mrb[0].mxu0
        %v545 = vpop.f32.mrb[0].mxu0
        %v546 = vadd.f32 %v215, %v545
        %v547 = vpop.f32.mrb[0].mxu0
        %548 = vmatprep.mubr.bf16.mxu0 0
        %549 = vmatmul.mubr.bf16.gmra.mrb[0].mxu0 %v371
        %v550 = vpop.f32.mrb[0].mxu0
        %v551 = vadd.f32 %v215, %v550
        %v552 = vpop.f32.mrb[0].mxu0
        %v553 = vpop.f32.mrb[0].mxu0
        %v554 = vadd.f32 %v215, %v553
        %v555 = vpop.f32.mrb[0].mxu0
        %556 = vdwg.mxu0
        %v557 = vmax.f32 %v415, 0.0
        %v558 = vmax.f32 %v418, 0.0
        %v559 = vmax.f32 %v423, 0.0
        %v560 = vmax.f32 %v426, 0.0
        %v561 = vmax.f32 %v431, 0.0
        %v562 = vmax.f32 %v434, 0.0
        %v563 = vmax.f32 %v439, 0.0
        %v564 = vmax.f32 %v442, 0.0
        %v565 = vmax.f32 %v447, 0.0
        %v566 = vmax.f32 %v450, 0.0
        %v567 = vmax.f32 %v455, 0.0
        %v568 = vmax.f32 %v458, 0.0
        %v569 = vmax.f32 %v463, 0.0
        %v570 = vmax.f32 %v466, 0.0
        %v571 = vmax.f32 %v471, 0.0
        %v572 = vmax.f32 %v474, 0.0
        %v573 = vmax.f32 %v479, 0.0
        %v574 = vmax.f32 %v482, 0.0
        %v575 = vmax.f32 %v487, 0.0
        %v576 = vmax.f32 %v490, 0.0
        %v577 = vmax.f32 %v495, 0.0
        %v578 = vmax.f32 %v498, 0.0
        %v579 = vmax.f32 %v503, 0.0
        %v580 = vmax.f32 %v506, 0.0
        %v581 = vmax.f32 %v511, 0.0
        %v582 = vmax.f32 %v514, 0.0
        %v583 = vmax.f32 %v519, 0.0
        %v584 = vmax.f32 %v522, 0.0
        %v585 = vmax.f32 %v527, 0.0
        %v586 = vmax.f32 %v530, 0.0
        %v587 = vmax.f32 %v535, 0.0
        %v588 = vmax.f32 %v538, 0.0
        %v589 = vmax.f32 %v543, 0.0
        %v590 = vmax.f32 %v546, 0.0
        %v591 = vmax.f32 %v551, 0.0
        %v592 = vmax.f32 %v554, 0.0
        %v593 = vmin.f32 %v557, 6.0
        %v594 = vmin.f32 %v558, 6.0
        %v595 = vmin.f32 %v559, 6.0
        %v596 = vmin.f32 %v560, 6.0
        %v597 = vmin.f32 %v561, 6.0
        %v598 = vmin.f32 %v562, 6.0
        %v599 = vmin.f32 %v563, 6.0
        %v600 = vmin.f32 %v564, 6.0
        %v601 = vmin.f32 %v565, 6.0
        %v602 = vmin.f32 %v566, 6.0
        %v603 = vmin.f32 %v567, 6.0
        %v604 = vmin.f32 %v568, 6.0
        %v605 = vmin.f32 %v569, 6.0
        %v606 = vmin.f32 %v570, 6.0
        %v607 = vmin.f32 %v571, 6.0
        %v608 = vmin.f32 %v572, 6.0
        %v609 = vmin.f32 %v573, 6.0
        %v610 = vmin.f32 %v574, 6.0
        %v611 = vmin.f32 %v575, 6.0
        %v612 = vmin.f32 %v576, 6.0
        %v613 = vmin.f32 %v577, 6.0
        %v614 = vmin.f32 %v578, 6.0
        %v615 = vmin.f32 %v579, 6.0
        %v616 = vmin.f32 %v580, 6.0
        %v617 = vmin.f32 %v581, 6.0
        %v618 = vmin.f32 %v582, 6.0
        %v619 = vmin.f32 %v583, 6.0
        %v620 = vmin.f32 %v584, 6.0
        %v621 = vmin.f32 %v585, 6.0
        %v622 = vmin.f32 %v586, 6.0
        %v623 = vmin.f32 %v587, 6.0
        %v624 = vmin.f32 %v588, 6.0
        %v625 = vmin.f32 %v589, 6.0
        %v626 = vmin.f32 %v590, 6.0
        %v627 = vmin.f32 %v591, 6.0
        %v628 = vmin.f32 %v592, 6.0
        %v629 = vpack.c.bf16 %v594, %v593
        %v630 = vpack.c.bf16 %v596, %v595
        %v631 = vpack.c.bf16 %v598, %v597
        %v632 = vpack.c.bf16 %v600, %v599
        %v633 = vpack.c.bf16 %v602, %v601
        %v634 = vpack.c.bf16 %v604, %v603
        %v635 = vpack.c.bf16 %v606, %v605
        %v636 = vpack.c.bf16 %v608, %v607
        %v637 = vpack.c.bf16 %v610, %v609
        %v638 = vpack.c.bf16 %v612, %v611
        %v639 = vpack.c.bf16 %v614, %v613
        %v640 = vpack.c.bf16 %v616, %v615
        %v641 = vpack.c.bf16 %v618, %v617
        %v642 = vpack.c.bf16 %v620, %v619
        %v643 = vpack.c.bf16 %v622, %v621
        %v644 = vpack.c.bf16 %v624, %v623
        %v645 = vpack.c.bf16 %v626, %v625
        %v646 = vpack.c.bf16 %v628, %v627
        %v665 = vunpack.c.l.b16 %v629
        %v666 = vunpack.c.h.b16 %v629
        %v667 = vunpack.c.l.b16 %v630
        %v668 = vunpack.c.h.b16 %v630
        %v669 = vunpack.c.l.b16 %v631
        %v670 = vunpack.c.h.b16 %v631
        %v671 = vunpack.c.l.b16 %v632
        %v672 = vunpack.c.h.b16 %v632
        %v673 = vunpack.c.l.b16 %v633
        %v674 = vunpack.c.h.b16 %v633
        %v675 = vunpack.c.l.b16 %v634
        %v676 = vunpack.c.h.b16 %v634
        %v677 = vunpack.c.l.b16 %v635
        %v678 = vunpack.c.h.b16 %v635
        %v679 = vunpack.c.l.b16 %v636
        %v680 = vunpack.c.h.b16 %v636
        %v681 = vunpack.c.l.b16 %v637
        %v682 = vunpack.c.h.b16 %v637
        %v683 = vunpack.c.l.b16 %v638
        %v684 = vunpack.c.h.b16 %v638
        %v685 = vunpack.c.l.b16 %v639
        %v686 = vunpack.c.h.b16 %v639
        %v687 = vunpack.c.l.b16 %v640
        %v688 = vunpack.c.h.b16 %v640
        %v689 = vunpack.c.l.b16 %v641
        %v690 = vunpack.c.h.b16 %v641
        %v691 = vunpack.c.l.b16 %v642
        %v692 = vunpack.c.h.b16 %v642
        %v693 = vunpack.c.l.b16 %v643
        %v694 = vunpack.c.h.b16 %v643
        %v695 = vunpack.c.l.b16 %v644
        %v696 = vunpack.c.h.b16 %v644
        %v697 = vunpack.c.l.b16 %v645
        %v698 = vunpack.c.h.b16 %v645
        %v699 = vunpack.c.l.b16 %v646
        %v700 = vunpack.c.h.b16 %v646
        %v701 = vpack.c.b16 %v665, %v665
        %v702 = vpack.c.b16 %v666, %v666
        %v703 = vpack.c.b16 %v667, %v667
        %v704 = vpack.c.b16 %v668, %v668
        %v705 = vpack.c.b16 %v669, %v669
        %v706 = vpack.c.b16 %v670, %v670
        %v707 = vpack.c.b16 %v671, %v671
        %v708 = vpack.c.b16 %v672, %v672
        %v709 = vpack.c.b16 %v673, %v673
        %v710 = vpack.c.b16 %v674, %v674
        %v711 = vpack.c.b16 %v675, %v675
        %v712 = vpack.c.b16 %v676, %v676
        %v713 = vpack.c.b16 %v677, %v677
        %v714 = vpack.c.b16 %v678, %v678
        %v715 = vpack.c.b16 %v679, %v679
        %v716 = vpack.c.b16 %v680, %v680
        %v717 = vpack.c.b16 %v681, %v681
        %v718 = vpack.c.b16 %v682, %v682
        %v719 = vpack.c.b16 %v683, %v683
        %v720 = vpack.c.b16 %v684, %v684
        %v721 = vpack.c.b16 %v685, %v685
        %v722 = vpack.c.b16 %v686, %v686
        %v723 = vpack.c.b16 %v687, %v687
        %v724 = vpack.c.b16 %v688, %v688
        %v725 = vpack.c.b16 %v689, %v689
        %v726 = vpack.c.b16 %v690, %v690
        %v727 = vpack.c.b16 %v691, %v691
        %v728 = vpack.c.b16 %v692, %v692
        %v729 = vpack.c.b16 %v693, %v693
        %v730 = vpack.c.b16 %v694, %v694
        %v731 = vpack.c.b16 %v695, %v695
        %v732 = vpack.c.b16 %v696, %v696
        %v733 = vpack.c.b16 %v697, %v697
        %v734 = vpack.c.b16 %v698, %v698
        %v735 = vpack.c.b16 %v699, %v699
        %v736 = vpack.c.b16 %v700, %v700
        %773 = vst [vmem:[%s163] sm:$0xf] %v701
        %774 = vst [vmem:[%s163 + $0x4] sm:$0xf] %v702
        %775 = vst [vmem:[%s163 + $0x8] sm:$0xf] %v703
        %776 = vst [vmem:[%s163 + $0xc] sm:$0xf] %v704
        %777 = vst [vmem:[%s163 + $0x10] sm:$0xf] %v705
        %778 = vst [vmem:[%s163 + $0x14] sm:$0xf] %v706
        %779 = vst [vmem:[%s163 + $0x18] sm:$0xf] %v707
        %780 = vst [vmem:[%s163 + $0x1c] sm:$0xf] %v708
        %781 = vst [vmem:[%s163 + $0x20] sm:$0xf] %v709
        %782 = vst [vmem:[%s163 + $0x24] sm:$0xf] %v710
        %783 = vst [vmem:[%s163 + $0x28] sm:$0xf] %v711
        %784 = vst [vmem:[%s163 + $0x2c] sm:$0xf] %v712
        %785 = vst [vmem:[%s163 + $0x30] sm:$0xf] %v713
        %786 = vst [vmem:[%s163 + $0x34] sm:$0xf] %v714
        %787 = vst [vmem:[%s163 + $0x38] sm:$0xf] %v715
        %788 = vst [vmem:[%s163 + $0x3c] sm:$0xf] %v716
        %789 = vst [vmem:[%s163 + $0x40] sm:$0xf] %v717
        %790 = vst [vmem:[%s163 + $0x44] sm:$0xf] %v718
        %791 = vst [vmem:[%s163 + $0x48] sm:$0xf] %v719
        %792 = vst [vmem:[%s163 + $0x4c] sm:$0xf] %v720
        %793 = vst [vmem:[%s163 + $0x50] sm:$0xf] %v721
        %794 = vst [vmem:[%s163 + $0x54] sm:$0xf] %v722
        %795 = vst [vmem:[%s163 + $0x58] sm:$0xf] %v723
        %796 = vst [vmem:[%s163 + $0x5c] sm:$0xf] %v724
        %797 = vst [vmem:[%s163 + $0x60] sm:$0xf] %v725
        %798 = vst [vmem:[%s163 + $0x64] sm:$0xf] %v726
        %799 = vst [vmem:[%s163 + $0x68] sm:$0xf] %v727
        %800 = vst [vmem:[%s163 + $0x6c] sm:$0xf] %v728
        %801 = vst [vmem:[%s163 + $0x70] sm:$0xf] %v729
        %802 = vst [vmem:[%s163 + $0x74] sm:$0xf] %v730
        %803 = vst [vmem:[%s163 + $0x78] sm:$0xf] %v731
        %804 = vst [vmem:[%s163 + $0x7c] sm:$0xf] %v732
        %805 = vst [vmem:[%s163 + $0x80] sm:$0xf] %v733
        %806 = vst [vmem:[%s163 + $0x84] sm:$0xf] %v734
        %807 = vst [vmem:[%s163 + $0x88] sm:$0xf] %v735
        %808 = vst [vmem:[%s163 + $0x8c] sm:$0xf] %v736
        %s809 = sand.u32 %s93, 1
        %s810 = scalar_lea.sflag [#allocation3], %s809
        %s811 = sand.u32 %s93, 1
        %s812 = smul.addr %s811, 144
        %s813 = scalar_lea.vmem [#allocation2], %s812
        // Predicated region
        $region33: #{tpu_custom_call.1} parent=31 // pred_check
          %p814 = pneg %p103
        $region34: #{tpu_custom_call.1} parent=31 // pred_check_branch
          %816 = sbr.rel (%p814) target = $region36
        $region35: #{tpu_custom_call.1} parent=31 // pred_region
          %s818 = ssub.s32 2304, 2304
          %819 = vsyncadd %s810, %s818
          %s820 = smul.addr %s17, 36
          %s821 = smul.addr %s820, 64
          %s822 = scalar_lea.hbm %s3, %s821
          %s823 = sshll.u32 %s813, 4
          %s824 = int_to_ptr.vmem [resolvable:$true] %s823
          %829 = dma.vmem_to_hbm [thread:$0]  %s824, 2304, %s822, %s810, 64, 64, 4
        $region36: #{tpu_custom_call.1} parent=31 // pred_fallthru
          _
      $region32: #{tpu_custom_call.1} parent=5 // pred_fallthru
        _
      %p830 = scmp.le.s32.totalorder 2, %s12
      // Predicated region
      $region37: #{tpu_custom_call.1} parent=5 // pred_check
        %p831 = pneg %p830
      $region38: #{tpu_custom_call.1} parent=5 // pred_check_branch
        %833 = sbr.rel (%p831) target = $region40
      $region39: #{tpu_custom_call.1} parent=5 // pred_region
        %s834 = ssub.s32 %s12, 2
        // Predicated region
        $region41: #{tpu_custom_call.1} parent=39 // pred_check
          %p835 = pneg %p109
        $region42: #{tpu_custom_call.1} parent=39 // pred_check_branch
          %837 = sbr.rel (%p835) target = $region44
        $region43: #{tpu_custom_call.1} parent=39 // pred_region
          %s838 = sand.u32 %s94, 1
          %s839 = scalar_lea.sflag [#allocation3], %s838
          %s840 = sand.u32 %s94, 1
          %s841 = smul.addr %s840, 144
          %s842 = scalar_lea.vmem [#allocation2], %s841
          %843 = dma.done %s839, 2304
        $region44: #{tpu_custom_call.1} parent=39 // pred_fallthru
          _
      $region40: #{tpu_custom_call.1} parent=5 // pred_fallthru
        _
    $region6: #{tpu_custom_call.1} parent=1 // loop_footer
      %s16 = sadd.s32 1, %s12
    $region7: #{tpu_custom_call.1} parent=1 // loop_footer_branch
      %11 = sbr.rel target = $region3
    $region8: #{tpu_custom_call.1} parent=1 // loop_exit
      _
    %844 = vsyncpa [#allocation3], 1
    %s845 = scalar_lea.sflag [#allocation3], 1
    %846 = vsyncpa %s845, 1

</llo_original>
